<compile_context>
chip_gen: v6e
topology: v6e:2x2x1
jax: 0.10.0
libtpu: 0.0.40
codegen_flags: <defaults>
</compile_context>

<pallas_src>
import functools
import itertools

import numpy as np
import jax
import jax.numpy as jnp
from jax.experimental import pallas as pl
from jax.experimental.pallas import tpu as pltpu


def _matcher_cost_kernel(logits_ref, boxes_ref, onehot_ref, tgtT_ref, out_ref,
                         *, cost_class, cost_bbox, cost_giou):
    # logits_ref: [TM, C]   (row tile of flattened bs*num_queries, num_classes) f32
    # boxes_ref : [TM, 4]   (cx, cy, w, h) f32
    # onehot_ref: [C, T]    one-hot of target class ids, transposed, bf16 (targets on lanes)
    # tgtT_ref  : [4, T]    target boxes cxcywh, transposed, f32 (targets on lanes)
    # out_ref   : [TM, T]   weighted matching cost (f32)
    logits = logits_ref[...]
    m = jnp.max(logits, axis=-1, keepdims=True)
    e = jnp.exp(logits - m)
    prob = e / jnp.sum(e, axis=-1, keepdims=True)                        # softmax(-1), [TM, C]

    # cost_class contribution = -out_prob[:, tgt_ids] == -(prob @ onehot); sign folded below.
    pdotq = jnp.dot(prob.astype(jnp.bfloat16), onehot_ref[...],
                    preferred_element_type=jnp.float32)                  # [TM, T]

    b = boxes_ref[...]                                                   # [TM, 4]
    t = tgtT_ref[...]                                                    # [4, T]

    cxp, cyp, wp, hp = b[:, 0:1], b[:, 1:2], b[:, 2:3], b[:, 3:4]        # [TM, 1]
    cxt, cyt, wt, ht = t[0:1, :], t[1:2, :], t[2:3, :], t[3:4, :]        # [1, T]

    # cost_bbox = cdist(out_bbox, tgt_bbox, p=1)
    c_bbox = (jnp.abs(cxp - cxt) + jnp.abs(cyp - cyt)
              + jnp.abs(wp - wt) + jnp.abs(hp - ht))                     # [TM, T]

    # cxcywh -> xyxy
    x1p, y1p = cxp - 0.5 * wp, cyp - 0.5 * hp
    x2p, y2p = cxp + 0.5 * wp, cyp + 0.5 * hp
    x1t, y1t = cxt - 0.5 * wt, cyt - 0.5 * ht
    x2t, y2t = cxt + 0.5 * wt, cyt + 0.5 * ht

    area_p = (x2p - x1p) * (y2p - y1p)                                   # [TM, 1]
    area_t = (x2t - x1t) * (y2t - y1t)                                   # [1, T]

    lt_x = jnp.maximum(x1p, x1t)
    lt_y = jnp.maximum(y1p, y1t)
    rb_x = jnp.minimum(x2p, x2t)
    rb_y = jnp.minimum(y2p, y2t)
    inter = jnp.maximum(rb_x - lt_x, 0.0) * jnp.maximum(rb_y - lt_y, 0.0)
    union = area_p + area_t - inter
    # EUP reciprocal instead of VALU divide (kernel is VALU-bound on the [TM, T] box math).
    iou = inter * pl.reciprocal(union, approx=True)

    el_x = jnp.minimum(x1p, x1t)
    el_y = jnp.minimum(y1p, y1t)
    er_x = jnp.maximum(x2p, x2t)
    er_y = jnp.maximum(y2p, y2t)
    enc = jnp.maximum(er_x - el_x, 0.0) * jnp.maximum(er_y - el_y, 0.0)
    giou = iou - (enc - union) * pl.reciprocal(enc, approx=True)         # [TM, T]

    # Signs of cost_class / cost_giou folded into the weights (no full-tile negations).
    out_ref[...] = cost_bbox * c_bbox - cost_class * pdotq - cost_giou * giou


def _round_up(x, m):
    return ((x + m - 1) // m) * m


def hungarian_cost_matrix(pred_logits, pred_boxes, tgt_ids, tgt_bbox,
                          cost_class=1.0, cost_bbox=1.0, cost_giou=1.0):
    """Returns C of shape [bs, num_queries, total_targets] (float32)."""
    bs, nq, nc = pred_logits.shape
    n = bs * nq
    t = int(tgt_bbox.shape[0])

    # Targets on the lane axis (pad to 128).
    t_pad = _round_up(max(t, 1), 128)

    # Row tile: keep one output tile ~<=4 MiB so double-buffered tiles fit every
    # generation's scoped VMEM; 128-aligned when large (MXU / vreg packing).
    out_tile_budget_bytes = 4 * 1024 * 1024
    tm_cap = max(8, out_tile_budget_bytes // (t_pad * 4))
    tm_cap = (tm_cap // 128) * 128 if tm_cap >= 128 else (tm_cap // 8) * 8
    TM = min(tm_cap, _round_up(n, 8))
    n_pad = _round_up(n, TM)
    grid = (n_pad // TM,)

    logits_flat = pred_logits.reshape(n, nc).astype(jnp.float32)
    boxes_flat = pred_boxes.reshape(n, 4).astype(jnp.float32)

    # Pad rows (extra "queries"): zeros for logits, valid dummy boxes to keep GIoU finite.
    logits_p = jnp.zeros((n_pad, nc), jnp.float32).at[:n].set(logits_flat)
    dummy_box = jnp.array([0.5, 0.5, 1.0, 1.0], jnp.float32)
    boxes_p = jnp.broadcast_to(dummy_box, (n_pad, 4)).at[:n].set(boxes_flat)

    # One-hot of target ids, transposed: [nc, t_pad] in bf16 (exactly representable;
    # padded columns are all-zero).
    onehot = jax.nn.one_hot(tgt_ids, nc, dtype=jnp.bfloat16).T            # [nc, t]
    onehot_p = jnp.zeros((nc, t_pad), jnp.bfloat16).at[:, :t].set(onehot)

    # Target boxes transposed: [4, t_pad] (padded columns get dummy valid boxes).
    tgtT = tgt_bbox.astype(jnp.float32).T                                 # [4, t]
    tgtT_p = jnp.broadcast_to(dummy_box[:, None], (4, t_pad)).at[:, :t].set(tgtT)

    kernel = functools.partial(_matcher_cost_kernel,
                               cost_class=float(cost_class),
                               cost_bbox=float(cost_bbox),
                               cost_giou=float(cost_giou))

    out = pl.pallas_call(
        kernel,
        out_shape=jax.ShapeDtypeStruct((n_pad, t_pad), jnp.float32),
        grid=grid,
        in_specs=[
            pl.BlockSpec((TM, nc), lambda i: (i, 0)),      # row-tiled
            pl.BlockSpec((TM, 4), lambda i: (i, 0)),       # row-tiled
            pl.BlockSpec((nc, t_pad), lambda i: (0, 0)),   # grid-invariant (resident)
            pl.BlockSpec((4, t_pad), lambda i: (0, 0)),    # grid-invariant (resident)
        ],
        out_specs=pl.BlockSpec((TM, t_pad), lambda i: (i, 0)),
        compiler_params=pltpu.CompilerParams(
            dimension_semantics=("parallel",),             # row tiles shard across TCs (v7x)
            vmem_limit_bytes=48 * 1024 * 1024),
    )(logits_p, boxes_p, onehot_p, tgtT_p)

    return out[:n, :t].reshape(bs, nq, t)


# TODO(synk): scipy's linear_sum_assignment (Hungarian) is host-side, data-dependent
# control flow with no clean Pallas equivalent; done exactly on host for small sizes.
def _linear_sum_assignment_exact(c):
    c = np.asarray(c, dtype=np.float64)
    nr, ncol = c.shape
    if ncol == 0:
        return np.zeros((0,), np.int64), np.zeros((0,), np.int64)
    best_rows, best_cost = None, np.inf
    for rows in itertools.permutations(range(nr), ncol):
        cost = sum(c[r, j] for j, r in enumerate(rows))
        if cost < best_cost:
            best_cost, best_rows = cost, rows
    pairs = sorted(zip(best_rows, range(ncol)))
    i = np.array([p[0] for p in pairs], dtype=np.int64)
    j = np.array([p[1] for p in pairs], dtype=np.int64)
    return i, j


def hungarian_matcher(outputs, targets, cost_class=1.0, cost_bbox=1.0, cost_giou=1.0):
    tgt_ids = jnp.concatenate([v["labels"] for v in targets])
    tgt_bbox = jnp.concatenate([v["boxes"] for v in targets])
    C = hungarian_cost_matrix(outputs["pred_logits"], outputs["pred_boxes"],
                              tgt_ids, tgt_bbox, cost_class, cost_bbox, cost_giou)
    C = jax.block_until_ready(C)
    C_np = np.asarray(C)
    sizes = [int(v["boxes"].shape[0]) for v in targets]
    splits = np.cumsum(sizes)[:-1]
    chunks = np.split(C_np, splits, axis=-1)
    return [_linear_sum_assignment_exact(chunks[b][b]) for b in range(len(targets))]


def _reference_cost_matrix(pred_logits, pred_boxes, tgt_ids, tgt_bbox,
                           cost_class=1.0, cost_bbox=1.0, cost_giou=1.0):
    bs, nq, _ = pred_logits.shape
    prob = jax.nn.softmax(pred_logits.reshape(bs * nq, -1), axis=-1)
    out_bbox = pred_boxes.reshape(bs * nq, 4)
    c_class = -prob[:, tgt_ids]
    c_bbox = jnp.sum(jnp.abs(out_bbox[:, None, :] - tgt_bbox[None, :, :]), axis=-1)

    def to_xyxy(b):
        cx, cy, w, h = b[..., 0], b[..., 1], b[..., 2], b[..., 3]
        return jnp.stack([cx - 0.5 * w, cy - 0.5 * h, cx + 0.5 * w, cy + 0.5 * h], -1)

    b1, b2 = to_xyxy(out_bbox), to_xyxy(tgt_bbox)
    a1 = (b1[:, 2] - b1[:, 0]) * (b1[:, 3] - b1[:, 1])
    a2 = (b2[:, 2] - b2[:, 0]) * (b2[:, 3] - b2[:, 1])
    lt = jnp.maximum(b1[:, None, :2], b2[None, :, :2])
    rb = jnp.minimum(b1[:, None, 2:], b2[None, :, 2:])
    wh = jnp.clip(rb - lt, 0)
    inter = wh[..., 0] * wh[..., 1]
    union = a1[:, None] + a2[None, :] - inter
    iou = inter / union
    lt2 = jnp.minimum(b1[:, None, :2], b2[None, :, :2])
    rb2 = jnp.maximum(b1[:, None, 2:], b2[None, :, 2:])
    wh2 = jnp.clip(rb2 - lt2, 0)
    enc = wh2[..., 0] * wh2[..., 1]
    giou = iou - (enc - union) / enc
    C = cost_bbox * c_bbox + cost_class * c_class + cost_giou * (-giou)
    return C.reshape(bs, nq, -1)


if __name__ == "__main__":
    key = jax.random.PRNGKey(0)
    bs, num_queries, num_classes = 2, 8, 8
    sizes = [2, 3]

    k1, k2, k3, k4 = jax.random.split(key, 4)
    pred_logits = jax.random.normal(k1, (bs, num_queries, num_classes), jnp.float32)
    pred_boxes = jnp.concatenate(
        [jax.random.uniform(k2, (bs, num_queries, 2), minval=0.2, maxval=0.8),
         jax.random.uniform(k3, (bs, num_queries, 2), minval=0.1, maxval=0.3)], axis=-1)

    tkeys = jax.random.split(k4, 2 * len(sizes))
    targets = []
    for bi, s in enumerate(sizes):
        labels = jax.random.randint(tkeys[2 * bi], (s,), 0, num_classes)
        boxes = jnp.concatenate(
            [jax.random.uniform(tkeys[2 * bi + 1], (s, 2), minval=0.2, maxval=0.8),
             jax.random.uniform(tkeys[2 * bi + 1], (s, 2), minval=0.1, maxval=0.3)], axis=-1)
        targets.append({"labels": labels, "boxes": boxes})

    outputs = {"pred_logits": pred_logits, "pred_boxes": pred_boxes}

    # Kernel cost matrix + correctness check against pure-JAX reference.
    # Tolerance loosened vs. exact-f32 version: bf16 class matmul (~4e-3 abs on prob)
    # and approx EUP reciprocals (~2e-4 rel) are well within what matters for matching.
    tgt_ids = jnp.concatenate([v["labels"] for v in targets])
    tgt_bbox = jnp.concatenate([v["boxes"] for v in targets])
    C_kernel = jax.block_until_ready(
        hungarian_cost_matrix(pred_logits, pred_boxes, tgt_ids, tgt_bbox))
    C_ref = _reference_cost_matrix(pred_logits, pred_boxes, tgt_ids, tgt_bbox)
    np.testing.assert_allclose(np.asarray(C_kernel), np.asarray(C_ref),
                               rtol=1e-2, atol=1e-2)

    indices = hungarian_matcher(outputs, targets)
    assert len(indices) == bs
    for (i, j), s in zip(indices, sizes):
        assert len(i) == len(j) == min(num_queries, s)

    print("KERNEL_OK")
</pallas_src>

<mosaic_0001>
module attributes {stable_mosaic.version = 11 : i64} {
  func.func @_matcher_cost_kernel(%arg0: i32, %arg1: memref<16x8xf32, #tpu.memory_space<vmem>>, %arg2: memref<16x4xf32, #tpu.memory_space<vmem>>, %arg3: memref<8x128xbf16, #tpu.memory_space<vmem>>, %arg4: memref<4x128xf32, #tpu.memory_space<vmem>>, %arg5: memref<16x128xf32, #tpu.memory_space<vmem>>) attributes {dimension_semantics = [#tpu.dimension_semantics<parallel>], iteration_bounds = array<i64: 1>, scalar_prefetch = 0 : i64, scratch_operands = 0 : i64, tpu.core_type = #tpu.core_type<tc>, window_params = [{transform_indices = @transform_0, window_bounds = array<i64: 16, 8>}, {transform_indices = @transform_1, window_bounds = array<i64: 16, 4>}, {pipeline_mode = #tpu.pipeline_mode<synchronous>, transform_indices = @transform_2, window_bounds = array<i64: 8, 128>}, {pipeline_mode = #tpu.pipeline_mode<synchronous>, transform_indices = @transform_3, window_bounds = array<i64: 4, 128>}, {transform_indices = @transform_4, window_bounds = array<i64: 16, 128>}]} {
    %c0 = arith.constant 0 : index
    %c0_0 = arith.constant 0 : index
    %0 = vector.load %arg1[%c0, %c0_0] : memref<16x8xf32, #tpu.memory_space<vmem>>, vector<16x8xf32>
    %cst = arith.constant dense<0xFF800000> : vector<16xf32>
    %1 = vector.multi_reduction <maximumf>, %0, %cst [1] : vector<16x8xf32> to vector<16xf32>
    %2 = vector.shape_cast %1 : vector<16xf32> to vector<16x1xf32>
    %3 = vector.broadcast %2 : vector<16x1xf32> to vector<16x8xf32>
    %4 = arith.subf %0, %3 : vector<16x8xf32>
    %5 = math.exp %4 : vector<16x8xf32>
    %cst_1 = arith.constant dense<0.000000e+00> : vector<16xf32>
    %6 = vector.multi_reduction <add>, %5, %cst_1 [1] : vector<16x8xf32> to vector<16xf32>
    %7 = vector.shape_cast %6 : vector<16xf32> to vector<16x1xf32>
    %8 = vector.broadcast %7 : vector<16x1xf32> to vector<16x8xf32>
    %9 = arith.divf %5, %8 : vector<16x8xf32>
    %10 = arith.truncf %9 : vector<16x8xf32> to vector<16x8xbf16>
    %c0_2 = arith.constant 0 : index
    %c0_3 = arith.constant 0 : index
    %11 = vector.load %arg3[%c0_2, %c0_3] : memref<8x128xbf16, #tpu.memory_space<vmem>>, vector<8x128xbf16>
    %cst_4 = arith.constant dense<0.000000e+00> : vector<16x128xf32>
    %12 = tpu.matmul %10, %11, %cst_4 {dimension_numbers = #tpu.dot_dimension_numbers<[1], [0], [0], [1], [0, 0, 1, 1], [], []>} : vector<16x8xbf16>, vector<8x128xbf16>, vector<16x128xf32> -> vector<16x128xf32>
    %c0_5 = arith.constant 0 : index
    %c0_6 = arith.constant 0 : index
    %13 = vector.load %arg2[%c0_5, %c0_6] : memref<16x4xf32, #tpu.memory_space<vmem>>, vector<16x4xf32>
    %c0_7 = arith.constant 0 : index
    %c0_8 = arith.constant 0 : index
    %14 = vector.load %arg4[%c0_7, %c0_8] : memref<4x128xf32, #tpu.memory_space<vmem>>, vector<4x128xf32>
    %15 = vector.extract_strided_slice %13 {offsets = [0, 0], sizes = [16, 1], strides = [1, 1]} : vector<16x4xf32> to vector<16x1xf32>
    %16 = vector.extract_strided_slice %13 {offsets = [0, 1], sizes = [16, 1], strides = [1, 1]} : vector<16x4xf32> to vector<16x1xf32>
    %17 = vector.extract_strided_slice %13 {offsets = [0, 2], sizes = [16, 1], strides = [1, 1]} : vector<16x4xf32> to vector<16x1xf32>
    %18 = vector.extract_strided_slice %13 {offsets = [0, 3], sizes = [16, 1], strides = [1, 1]} : vector<16x4xf32> to vector<16x1xf32>
    %19 = vector.extract_strided_slice %14 {offsets = [0, 0], sizes = [1, 128], strides = [1, 1]} : vector<4x128xf32> to vector<1x128xf32>
    %20 = vector.extract_strided_slice %14 {offsets = [1, 0], sizes = [1, 128], strides = [1, 1]} : vector<4x128xf32> to vector<1x128xf32>
    %21 = vector.extract_strided_slice %14 {offsets = [2, 0], sizes = [1, 128], strides = [1, 1]} : vector<4x128xf32> to vector<1x128xf32>
    %22 = vector.extract_strided_slice %14 {offsets = [3, 0], sizes = [1, 128], strides = [1, 1]} : vector<4x128xf32> to vector<1x128xf32>
    %23 = vector.broadcast %15 : vector<16x1xf32> to vector<16x128xf32>
    %24 = vector.broadcast %19 : vector<1x128xf32> to vector<16x128xf32>
    %25 = arith.subf %23, %24 : vector<16x128xf32>
    %26 = math.absf %25 : vector<16x128xf32>
    %27 = vector.broadcast %16 : vector<16x1xf32> to vector<16x128xf32>
    %28 = vector.broadcast %20 : vector<1x128xf32> to vector<16x128xf32>
    %29 = arith.subf %27, %28 : vector<16x128xf32>
    %30 = math.absf %29 : vector<16x128xf32>
    %31 = arith.addf %26, %30 : vector<16x128xf32>
    %32 = vector.broadcast %17 : vector<16x1xf32> to vector<16x128xf32>
    %33 = vector.broadcast %21 : vector<1x128xf32> to vector<16x128xf32>
    %34 = arith.subf %32, %33 : vector<16x128xf32>
    %35 = math.absf %34 : vector<16x128xf32>
    %36 = arith.addf %31, %35 : vector<16x128xf32>
    %37 = vector.broadcast %18 : vector<16x1xf32> to vector<16x128xf32>
    %38 = vector.broadcast %22 : vector<1x128xf32> to vector<16x128xf32>
    %39 = arith.subf %37, %38 : vector<16x128xf32>
    %40 = math.absf %39 : vector<16x128xf32>
    %41 = arith.addf %36, %40 : vector<16x128xf32>
    %cst_9 = arith.constant 5.000000e-01 : f32
    %42 = vector.broadcast %cst_9 : f32 to vector<16x1xf32>
    %43 = arith.mulf %42, %17 : vector<16x1xf32>
    %44 = arith.subf %15, %43 : vector<16x1xf32>
    %cst_10 = arith.constant 5.000000e-01 : f32
    %45 = vector.broadcast %cst_10 : f32 to vector<16x1xf32>
    %46 = arith.mulf %45, %18 : vector<16x1xf32>
    %47 = arith.subf %16, %46 : vector<16x1xf32>
    %cst_11 = arith.constant 5.000000e-01 : f32
    %48 = vector.broadcast %cst_11 : f32 to vector<16x1xf32>
    %49 = arith.mulf %48, %17 : vector<16x1xf32>
    %50 = arith.addf %15, %49 : vector<16x1xf32>
    %cst_12 = arith.constant 5.000000e-01 : f32
    %51 = vector.broadcast %cst_12 : f32 to vector<16x1xf32>
    %52 = arith.mulf %51, %18 : vector<16x1xf32>
    %53 = arith.addf %16, %52 : vector<16x1xf32>
    %cst_13 = arith.constant 5.000000e-01 : f32
    %54 = vector.broadcast %cst_13 : f32 to vector<1x128xf32>
    %55 = arith.mulf %54, %21 : vector<1x128xf32>
    %56 = arith.subf %19, %55 : vector<1x128xf32>
    %cst_14 = arith.constant 5.000000e-01 : f32
    %57 = vector.broadcast %cst_14 : f32 to vector<1x128xf32>
    %58 = arith.mulf %57, %22 : vector<1x128xf32>
    %59 = arith.subf %20, %58 : vector<1x128xf32>
    %cst_15 = arith.constant 5.000000e-01 : f32
    %60 = vector.broadcast %cst_15 : f32 to vector<1x128xf32>
    %61 = arith.mulf %60, %21 : vector<1x128xf32>
    %62 = arith.addf %19, %61 : vector<1x128xf32>
    %cst_16 = arith.constant 5.000000e-01 : f32
    %63 = vector.broadcast %cst_16 : f32 to vector<1x128xf32>
    %64 = arith.mulf %63, %22 : vector<1x128xf32>
    %65 = arith.addf %20, %64 : vector<1x128xf32>
    %66 = arith.subf %50, %44 : vector<16x1xf32>
    %67 = arith.subf %53, %47 : vector<16x1xf32>
    %68 = arith.mulf %66, %67 : vector<16x1xf32>
    %69 = arith.subf %62, %56 : vector<1x128xf32>
    %70 = arith.subf %65, %59 : vector<1x128xf32>
    %71 = arith.mulf %69, %70 : vector<1x128xf32>
    %72 = vector.broadcast %44 : vector<16x1xf32> to vector<16x128xf32>
    %73 = vector.broadcast %56 : vector<1x128xf32> to vector<16x128xf32>
    %74 = arith.maximumf %72, %73 : vector<16x128xf32>
    %75 = vector.broadcast %47 : vector<16x1xf32> to vector<16x128xf32>
    %76 = vector.broadcast %59 : vector<1x128xf32> to vector<16x128xf32>
    %77 = arith.maximumf %75, %76 : vector<16x128xf32>
    %78 = vector.broadcast %50 : vector<16x1xf32> to vector<16x128xf32>
    %79 = vector.broadcast %62 : vector<1x128xf32> to vector<16x128xf32>
    %80 = arith.minimumf %78, %79 : vector<16x128xf32>
    %81 = vector.broadcast %53 : vector<16x1xf32> to vector<16x128xf32>
    %82 = vector.broadcast %65 : vector<1x128xf32> to vector<16x128xf32>
    %83 = arith.minimumf %81, %82 : vector<16x128xf32>
    %84 = arith.subf %80, %74 : vector<16x128xf32>
    %cst_17 = arith.constant 0.000000e+00 : f32
    %85 = vector.broadcast %cst_17 : f32 to vector<16x128xf32>
    %86 = arith.maximumf %84, %85 : vector<16x128xf32>
    %87 = arith.subf %83, %77 : vector<16x128xf32>
    %cst_18 = arith.constant 0.000000e+00 : f32
    %88 = vector.broadcast %cst_18 : f32 to vector<16x128xf32>
    %89 = arith.maximumf %87, %88 : vector<16x128xf32>
    %90 = arith.mulf %86, %89 : vector<16x128xf32>
    %91 = vector.broadcast %68 : vector<16x1xf32> to vector<16x128xf32>
    %92 = vector.broadcast %71 : vector<1x128xf32> to vector<16x128xf32>
    %93 = arith.addf %91, %92 : vector<16x128xf32>
    %94 = arith.subf %93, %90 : vector<16x128xf32>
    %95 = tpu.reciprocal %94 {approx = true} : vector<16x128xf32> -> vector<16x128xf32>
    %96 = arith.mulf %90, %95 : vector<16x128xf32>
    %97 = vector.broadcast %44 : vector<16x1xf32> to vector<16x128xf32>
    %98 = vector.broadcast %56 : vector<1x128xf32> to vector<16x128xf32>
    %99 = arith.minimumf %97, %98 : vector<16x128xf32>
    %100 = vector.broadcast %47 : vector<16x1xf32> to vector<16x128xf32>
    %101 = vector.broadcast %59 : vector<1x128xf32> to vector<16x128xf32>
    %102 = arith.minimumf %100, %101 : vector<16x128xf32>
    %103 = vector.broadcast %50 : vector<16x1xf32> to vector<16x128xf32>
    %104 = vector.broadcast %62 : vector<1x128xf32> to vector<16x128xf32>
    %105 = arith.maximumf %103, %104 : vector<16x128xf32>
    %106 = vector.broadcast %53 : vector<16x1xf32> to vector<16x128xf32>
    %107 = vector.broadcast %65 : vector<1x128xf32> to vector<16x128xf32>
    %108 = arith.maximumf %106, %107 : vector<16x128xf32>
    %109 = arith.subf %105, %99 : vector<16x128xf32>
    %cst_19 = arith.constant 0.000000e+00 : f32
    %110 = vector.broadcast %cst_19 : f32 to vector<16x128xf32>
    %111 = arith.maximumf %109, %110 : vector<16x128xf32>
    %112 = arith.subf %108, %102 : vector<16x128xf32>
    %cst_20 = arith.constant 0.000000e+00 : f32
    %113 = vector.broadcast %cst_20 : f32 to vector<16x128xf32>
    %114 = arith.maximumf %112, %113 : vector<16x128xf32>
    %115 = arith.mulf %111, %114 : vector<16x128xf32>
    %116 = arith.subf %115, %94 : vector<16x128xf32>
    %117 = tpu.reciprocal %115 {approx = true} : vector<16x128xf32> -> vector<16x128xf32>
    %118 = arith.mulf %116, %117 : vector<16x128xf32>
    %119 = arith.subf %96, %118 : vector<16x128xf32>
    %cst_21 = arith.constant 1.000000e+00 : f32
    %120 = vector.broadcast %cst_21 : f32 to vector<16x128xf32>
    %121 = arith.mulf %120, %41 : vector<16x128xf32>
    %cst_22 = arith.constant 1.000000e+00 : f32
    %122 = vector.broadcast %cst_22 : f32 to vector<16x128xf32>
    %123 = arith.mulf %122, %12 : vector<16x128xf32>
    %124 = arith.subf %121, %123 : vector<16x128xf32>
    %cst_23 = arith.constant 1.000000e+00 : f32
    %125 = vector.broadcast %cst_23 : f32 to vector<16x128xf32>
    %126 = arith.mulf %125, %119 : vector<16x128xf32>
    %127 = arith.subf %124, %126 : vector<16x128xf32>
    %c0_24 = arith.constant 0 : index
    %c0_25 = arith.constant 0 : index
    %128 = vector.load %arg5[%c0_24, %c0_25] : memref<16x128xf32, #tpu.memory_space<vmem>>, vector<16x128xf32>
    tpu.vector_store %arg5[%c0_24, %c0_25], %127 {strides = array<i32>} : memref<16x128xf32, #tpu.memory_space<vmem>>, vector<16x128xf32>,
    return
  }
  func.func @transform_0(%arg0: i32) -> (i32, i32) {
    %c0_i32 = arith.constant 0 : i32
    %c0_i32_0 = arith.constant 0 : i32
    return %arg0, %c0_i32 : i32, i32
  }
  func.func @transform_1(%arg0: i32) -> (i32, i32) {
    %c0_i32 = arith.constant 0 : i32
    %c0_i32_0 = arith.constant 0 : i32
    return %arg0, %c0_i32 : i32, i32
  }
  func.func @transform_2(%arg0: i32) -> (i32, i32) {
    %c0_i32 = arith.constant 0 : i32
    %c0_i32_0 = arith.constant 0 : i32
    %c0_i32_1 = arith.constant 0 : i32
    return %c0_i32, %c0_i32_0 : i32, i32
  }
  func.func @transform_3(%arg0: i32) -> (i32, i32) {
    %c0_i32 = arith.constant 0 : i32
    %c0_i32_0 = arith.constant 0 : i32
    %c0_i32_1 = arith.constant 0 : i32
    return %c0_i32, %c0_i32_0 : i32, i32
  }
  func.func @transform_4(%arg0: i32) -> (i32, i32) {
    %c0_i32 = arith.constant 0 : i32
    %c0_i32_0 = arith.constant 0 : i32
    return %arg0, %c0_i32 : i32, i32
  }
}

</mosaic_0001>

<llo_original>
// kernel: tpu_custom_call.1
$region0: #{tpu_custom_call.1}
  #allocation0 [shape = 'u32[]', space=smem, size = 0x4, offset = 0x4, fixed_abs, tag = 'smem constant byte address 0x4 - core index']
  #allocation1 [shape = 'u32[144,128]{1,0:T(1,128)}', space=vmem, size = 0x12000, scoped, tag = 'internal scratch']
  %s0 = inlined_call_operand.vmem [shape: f32[16,8], index: 0, kind: input, shape index: {}]
  %s1 = inlined_call_operand.vmem [shape: f32[16,4], index: 1, kind: input, shape index: {}]
  %s2 = inlined_call_operand.vmem [shape: bf16[8,128], index: 2, kind: input, shape index: {}]
  %s3 = inlined_call_operand.vmem [shape: f32[4,128], index: 3, kind: input, shape index: {}]
  %s4 = inlined_call_operand.hbm [shape: f32[16,128], index: 4, kind: output, shape index: {}]
  %s5 = sld [smem:[#allocation0]]
  $region26: #{tpu_custom_call.1} parent=0
    _
  %s7 = ssub.s32 1, %s5
  %s8 = scalar_select 0, %s7, %s5
  $region1: #{tpu_custom_call.1} parent=0
    #allocation2 [shape = 'u8[8192]{0}', space=vmem, size = 0x2000, scoped, tag = 'output window, operand 0, single buffered']
    #allocation3 [shape = 's32[1]{0}', space=sflag, size = 0x4, scoped, tag = 'scoped memory for tpu_custom_call.1']
    %9 = vsyncpa [#allocation3], 0
    // Predicated region
    $region2: #{tpu_custom_call.1} parent=1 // pred_check
      _
    $region3: #{tpu_custom_call.1} parent=1 // pred_check_branch
      %11 = sbr.rel (0) target = $region5
    $region4: #{tpu_custom_call.1} parent=1 // pred_region
      _
    $region5: #{tpu_custom_call.1} parent=1 // pred_fallthru
      _
    // Predicated region
    $region6: #{tpu_custom_call.1} parent=1 // pred_check
      _
    $region7: #{tpu_custom_call.1} parent=1 // pred_check_branch
      %13 = sbr.rel (0) target = $region9
    $region8: #{tpu_custom_call.1} parent=1 // pred_region
      _
    $region9: #{tpu_custom_call.1} parent=1 // pred_fallthru
      _
    // Predicated region
    $region10: #{tpu_custom_call.1} parent=1 // pred_check
      _
    $region11: #{tpu_custom_call.1} parent=1 // pred_check_branch
      %15 = sbr.rel (0) target = $region13
    $region12: #{tpu_custom_call.1} parent=1 // pred_region
      _
    $region13: #{tpu_custom_call.1} parent=1 // pred_fallthru
      _
    // Predicated region
    $region14: #{tpu_custom_call.1} parent=1 // pred_check
      _
    $region15: #{tpu_custom_call.1} parent=1 // pred_check_branch
      %17 = sbr.rel (0) target = $region17
    $region16: #{tpu_custom_call.1} parent=1 // pred_region
      _
    $region17: #{tpu_custom_call.1} parent=1 // pred_fallthru
      _
    %v19 = vld [vmem:[%s0] sm:$0xff]
    %v20 = vld [vmem:[%s0 + $0x8] sm:$0xff]
    %vm21 = vcmask 64512
    %v22 = vsel %vm21, %v19, -inf
    %23 = vmax.xlane.f32.xlu0 %v22
    %v24 = vpop.xlane.xlu0 %23
    %v25 = vsel %vm21, %v20, -inf
    %26 = vmax.xlane.f32.xlu0 %v25
    %v27 = vpop.xlane.xlu0 %26
    %v28 = vsub.f32 %v19, %v24
    %v29 = vsub.f32 %v20, %v27
    %v30 = vmul.f32 %v28, 1.442695
    %v31 = vpow.pop %v30
    %v32 = vmul.f32 %v29, 1.442695
    %v33 = vpow.pop %v32
    %v34 = vsel %vm21, %v31, 0.0
    %35 = vadd.xlane.f32.xlu0 %v34
    %v36 = vpop.xlane.xlu0 %35
    %v37 = vsel %vm21, %v33, 0.0
    %38 = vadd.xlane.f32.xlu0 %v37
    %v39 = vpop.xlane.xlu0 %38
    %v40 = vrcp.pop %v36
    %v41 = vmul.f32 %v31, %v40
    %v42 = vrcp.pop %v39
    %v43 = vmul.f32 %v33, %v42
    %v44 = vpack.c.bf16 %v43, %v41
    %v45 = vld [vmem:[%s2] sm:$0xf]
    %v47 = vsel %vm21, %v44, 0
    %vm49 = vcmask 1043456
    %v51 = vsel %vm49, %v45, 0
    %53 = vmatprep.subr.bf16.mxu0 0
    %54 = vmatpush1.bf16.msra.mxu0 0
    %55 = vmatprep.subr.bf16.mxu0 0
    %56 = vmatpush1.bf16.msra.mxu0 0
    %57 = vmatprep.subr.bf16.mxu0 0
    %58 = vmatpush1.bf16.msra.mxu0 0
    %59 = vmatprep.subr.bf16.mxu0 0
    %60 = vmatpush1.bf16.msra.mxu0 0
    %61 = vmatprep.subr.bf16.mxu0 0
    %62 = vmatpush1.bf16.msra.mxu0 0
    %63 = vmatprep.subr.bf16.mxu0 0
    %64 = vmatpush1.bf16.msra.mxu0 0
    %65 = vmatprep.subr.bf16.mxu0 0
    %66 = vmatpush1.bf16.msra.mxu0 0
    %67 = vmatprep.subr.bf16.mxu0 0
    %68 = vmatpush1.bf16.msra.mxu0 %v51
    %69 = vmatprep.subr.bf16.mxu0 0
    %70 = vmatpush2.bf16.msra.mxu0 0
    %71 = vmatprep.subr.bf16.mxu0 0
    %72 = vmatpush2.bf16.msra.mxu0 0
    %73 = vmatprep.subr.bf16.mxu0 0
    %74 = vmatpush2.bf16.msra.mxu0 0
    %75 = vmatprep.subr.bf16.mxu0 0
    %76 = vmatpush2.bf16.msra.mxu0 0
    %77 = vmatprep.subr.bf16.mxu0 0
    %78 = vmatpush2.bf16.msra.mxu0 0
    %79 = vmatprep.subr.bf16.mxu0 0
    %80 = vmatpush2.bf16.msra.mxu0 0
    %81 = vmatprep.subr.bf16.mxu0 0
    %82 = vmatpush2.bf16.msra.mxu0 0
    %83 = vmatprep.subr.bf16.mxu0 0
    %84 = vmatpush2.bf16.msra.mxu0 0
    %85 = vmatprep.mubr.bf16.mxu0 0
    %86 = vmatmul.mubr.bf16.gmra.mxu0 %v47
    %v87 = vpop.f32.mrf.mxu0
    %v88 = vadd.f32 0.0, %v87
    %v89 = vpop.f32.mrf.mxu0
    %v90 = vpop.f32.mrf.mxu0
    %v91 = vadd.f32 0.0, %v90
    %v92 = vpop.f32.mrf.mxu0
    %93 = vdwg.mxu0
    %v94 = vld [vmem:[%s1] sm:$0xff]
    %v95 = vld [vmem:[%s1 + $0x8] sm:$0xff]
    %v96 = vld [vmem:[%s3] sm:$0xf]
    %98 = vset.pattern.permute.xlu0 0
    %99 = vperm.xlu0 %98, %v94
    %v100 = vpop.permute.xlu0 %99
    %103 = vset.pattern.permute.xlu0 0
    %104 = vperm.xlu0 %103, %v95
    %v105 = vpop.permute.xlu0 %104
    %v107 = vlaneseq
    %v108 = vshrl.u32 %v107, 7
    %v109 = vsub.s32 0, %v108
    %v110 = vrot.slane %v96, %v109
    %v111 = vsub.f32 %v100, %v110
    %v112 = vsub.f32 %v105, %v110
    %v113 = vand.u32 2147483647, %v111
    %v114 = vand.u32 2147483647, %v112
    %115 = vset.pattern.permute.xlu0 1
    %116 = vperm.xlu0 %115, %v94
    %v117 = vpop.permute.xlu0 %116
    %119 = vset.pattern.permute.xlu0 1
    %120 = vperm.xlu0 %119, %v95
    %v121 = vpop.permute.xlu0 %120
    %v123 = vlaneseq
    %v124 = vshrl.u32 %v123, 7
    %v125 = vsub.s32 1, %v124
    %v126 = vrot.slane %v96, %v125
    %v127 = vsub.f32 %v117, %v126
    %v128 = vsub.f32 %v121, %v126
    %v129 = vand.u32 2147483647, %v127
    %v130 = vand.u32 2147483647, %v128
    %v131 = vadd.f32 %v113, %v129
    %v132 = vadd.f32 %v114, %v130
    %133 = vset.pattern.permute.xlu0 2
    %134 = vperm.xlu0 %133, %v94
    %v135 = vpop.permute.xlu0 %134
    %137 = vset.pattern.permute.xlu0 2
    %138 = vperm.xlu0 %137, %v95
    %v139 = vpop.permute.xlu0 %138
    %v141 = vlaneseq
    %v142 = vshrl.u32 %v141, 7
    %v143 = vsub.s32 2, %v142
    %v144 = vrot.slane %v96, %v143
    %v145 = vsub.f32 %v135, %v144
    %v146 = vsub.f32 %v139, %v144
    %v147 = vand.u32 2147483647, %v145
    %v148 = vand.u32 2147483647, %v146
    %v149 = vadd.f32 %v131, %v147
    %v150 = vadd.f32 %v132, %v148
    %151 = vset.pattern.permute.xlu0 3
    %152 = vperm.xlu0 %151, %v94
    %v153 = vpop.permute.xlu0 %152
    %155 = vset.pattern.permute.xlu0 3
    %156 = vperm.xlu0 %155, %v95
    %v157 = vpop.permute.xlu0 %156
    %v159 = vlaneseq
    %v160 = vshrl.u32 %v159, 7
    %v161 = vsub.s32 3, %v160
    %v162 = vrot.slane %v96, %v161
    %v163 = vsub.f32 %v153, %v162
    %v164 = vsub.f32 %v157, %v162
    %v165 = vand.u32 2147483647, %v163
    %v166 = vand.u32 2147483647, %v164
    %v167 = vadd.f32 %v149, %v165
    %v168 = vadd.f32 %v150, %v166
    %v169 = vmul.f32 %v94, 0.5
    %v170 = vmul.f32 %v95, 0.5
    %173 = vrot.lane.b32.xlu0 %v169, 126
    %v174 = vpop.permute.xlu0 %173
    %175 = vrot.lane.b32.xlu0 %v170, 126
    %v176 = vpop.permute.xlu0 %175
    %v179 = vsub.f32 %v94, %v174
    %v180 = vsub.f32 %v95, %v176
    %v181 = vadd.f32 %v94, %v174
    %v182 = vadd.f32 %v95, %v176
    %v183 = vmul.f32 %v96, 0.5
    %v185 = vrot.slane %v183, 2
    %v187 = vsub.f32 %v96, %v185
    %v188 = vadd.f32 %v96, %v185
    %v189 = vsub.f32 %v181, %v179
    %v190 = vsub.f32 %v182, %v180
    %193 = vrot.lane.b32.xlu0 %v189, 127
    %v194 = vpop.permute.xlu0 %193
    %195 = vrot.lane.b32.xlu0 %v190, 127
    %v196 = vpop.permute.xlu0 %195
    %v199 = vmul.f32 %v189, %v194
    %v200 = vmul.f32 %v190, %v196
    %v201 = vsub.f32 %v188, %v187
    %v203 = vrot.slane %v201, 1
    %v205 = vmul.f32 %v201, %v203
    %207 = vset.pattern.permute.xlu0 0
    %208 = vperm.xlu0 %207, %v179
    %v209 = vpop.permute.xlu0 %208
    %212 = vset.pattern.permute.xlu0 0
    %213 = vperm.xlu0 %212, %v180
    %v214 = vpop.permute.xlu0 %213
    %v216 = vlaneseq
    %v217 = vshrl.u32 %v216, 7
    %v218 = vsub.s32 0, %v217
    %v219 = vrot.slane %v187, %v218
    %v220 = vmax.f32 %v209, %v219
    %v221 = vmax.f32 %v214, %v219
    %222 = vset.pattern.permute.xlu0 1
    %223 = vperm.xlu0 %222, %v179
    %v224 = vpop.permute.xlu0 %223
    %226 = vset.pattern.permute.xlu0 1
    %227 = vperm.xlu0 %226, %v180
    %v228 = vpop.permute.xlu0 %227
    %v230 = vlaneseq
    %v231 = vshrl.u32 %v230, 7
    %v232 = vsub.s32 1, %v231
    %v233 = vrot.slane %v187, %v232
    %v234 = vmax.f32 %v224, %v233
    %v235 = vmax.f32 %v228, %v233
    %237 = vset.pattern.permute.xlu0 0
    %238 = vperm.xlu0 %237, %v181
    %v239 = vpop.permute.xlu0 %238
    %242 = vset.pattern.permute.xlu0 0
    %243 = vperm.xlu0 %242, %v182
    %v244 = vpop.permute.xlu0 %243
    %v246 = vlaneseq
    %v247 = vshrl.u32 %v246, 7
    %v248 = vsub.s32 0, %v247
    %v249 = vrot.slane %v188, %v248
    %v250 = vmin.f32 %v239, %v249
    %v251 = vmin.f32 %v244, %v249
    %252 = vset.pattern.permute.xlu0 1
    %253 = vperm.xlu0 %252, %v181
    %v254 = vpop.permute.xlu0 %253
    %256 = vset.pattern.permute.xlu0 1
    %257 = vperm.xlu0 %256, %v182
    %v258 = vpop.permute.xlu0 %257
    %v260 = vlaneseq
    %v261 = vshrl.u32 %v260, 7
    %v262 = vsub.s32 1, %v261
    %v263 = vrot.slane %v188, %v262
    %v264 = vmin.f32 %v254, %v263
    %v265 = vmin.f32 %v258, %v263
    %v266 = vsub.f32 %v250, %v220
    %v267 = vsub.f32 %v251, %v221
    %v268 = vmax.f32 %v266, 0.0
    %v269 = vmax.f32 %v267, 0.0
    %v270 = vsub.f32 %v264, %v234
    %v271 = vsub.f32 %v265, %v235
    %v272 = vmax.f32 %v270, 0.0
    %v273 = vmax.f32 %v271, 0.0
    %v274 = vmul.f32 %v268, %v272
    %v275 = vmul.f32 %v269, %v273
    %277 = vset.pattern.permute.xlu0 0
    %278 = vperm.xlu0 %277, %v199
    %v279 = vpop.permute.xlu0 %278
    %282 = vset.pattern.permute.xlu0 0
    %283 = vperm.xlu0 %282, %v200
    %v284 = vpop.permute.xlu0 %283
    %v286 = vlaneseq
    %v287 = vshrl.u32 %v286, 7
    %v288 = vsub.s32 0, %v287
    %v289 = vrot.slane %v205, %v288
    %v290 = vadd.f32 %v279, %v289
    %v291 = vadd.f32 %v284, %v289
    %v292 = vsub.f32 %v290, %v274
    %v293 = vsub.f32 %v291, %v275
    %v294 = vrcp.pop %v292
    %v295 = vrcp.pop %v293
    %v296 = vmul.f32 %v274, %v294
    %v297 = vmul.f32 %v275, %v295
    %v298 = vmin.f32 %v209, %v219
    %v299 = vmin.f32 %v214, %v219
    %v300 = vmin.f32 %v224, %v233
    %v301 = vmin.f32 %v228, %v233
    %v302 = vmax.f32 %v239, %v249
    %v303 = vmax.f32 %v244, %v249
    %v304 = vmax.f32 %v254, %v263
    %v305 = vmax.f32 %v258, %v263
    %v306 = vsub.f32 %v302, %v298
    %v307 = vsub.f32 %v303, %v299
    %v308 = vmax.f32 %v306, 0.0
    %v309 = vmax.f32 %v307, 0.0
    %v310 = vsub.f32 %v304, %v300
    %v311 = vsub.f32 %v305, %v301
    %v312 = vmax.f32 %v310, 0.0
    %v313 = vmax.f32 %v311, 0.0
    %v314 = vmul.f32 %v308, %v312
    %v315 = vmul.f32 %v309, %v313
    %v316 = vsub.f32 %v314, %v292
    %v317 = vsub.f32 %v315, %v293
    %v318 = vrcp.pop %v314
    %v319 = vrcp.pop %v315
    %v320 = vmul.f32 %v316, %v318
    %v321 = vmul.f32 %v317, %v319
    %v322 = vsub.f32 %v296, %v320
    %v323 = vsub.f32 %v297, %v321
    %v324 = vsub.f32 %v167, %v88
    %v325 = vsub.f32 %v168, %v91
    %v326 = vsub.f32 %v324, %v322
    %v327 = vsub.f32 %v325, %v323
    %328 = vst [vmem:[#allocation2] sm:$0xff] %v326
    %329 = vst [vmem:[#allocation2 + $0x8] sm:$0xff] %v327
    // Predicated region
    $region18: #{tpu_custom_call.1} parent=1 // pred_check
      _
    $region19: #{tpu_custom_call.1} parent=1 // pred_check_branch
      %331 = sbr.rel (0) target = $region21
    $region20: #{tpu_custom_call.1} parent=1 // pred_region
      %s333 = ssub.s32 256, 256
      %334 = vsyncadd [#allocation3], %s333
      %s335 = sshll.u32 [#allocation2], 4
      %s336 = int_to_ptr.vmem [resolvable:$true] %s335
      %341 = dma.vmem_to_hbm [thread:$0]  %s336, 256, %s4, [#allocation3], 128, 128, 8
    $region21: #{tpu_custom_call.1} parent=1 // pred_fallthru
      _
    // Predicated region
    $region22: #{tpu_custom_call.1} parent=1 // pred_check
      _
    $region23: #{tpu_custom_call.1} parent=1 // pred_check_branch
      %343 = sbr.rel (0) target = $region25
    $region24: #{tpu_custom_call.1} parent=1 // pred_region
      %344 = dma.done [#allocation3], 256
    $region25: #{tpu_custom_call.1} parent=1 // pred_fallthru
      _
    %345 = vsyncpa [#allocation3], 1

</llo_original>
